<compile_context>
chip_gen: v7x
topology: tpu7x:2x2x1
jax: 0.10.0
libtpu: 0.0.40
codegen_flags: <defaults>
</compile_context>

<pallas_src>
import functools

import jax
import jax.numpy as jnp
from jax import lax
from jax.experimental import pallas as pl
from jax.experimental.pallas import tpu as pltpu


def _round_up(x, m):
    return (x + m - 1) // m * m


def ddqn_mlp_kernel(x_ref, w1_ref, w2_ref, wh_ref, bias_ref, o_ref, sums_ref, *,
                    batch, tile_b, hidden_pad, head_pad):
    """Single-pass dueling-MLP kernel over one batch tile.

      h1   = relu(x @ W1 + b1)
      h2   = relu(h1 @ W2 + b2)
      head = h2 @ [Wv | Wa] + [bv | ba]      # col 0 = value, cols 1..A = advantage
      o    = head[:, 0:1] + head             # val + adv  (col 0 is junk, sliced off)
      sums = column sums of head over the VALID rows of this tile (f32),
             broadcast to 8 sublanes so the block is (8, head_pad)-aligned.

    The full-batch advantage mean (PyTorch: adv.unsqueeze(0).mean(1)) is applied
    in the wrapper from the per-tile sums, keeping the grid fully parallel.
    """
    i = pl.program_id(0)

    x = x_ref[...]                               # [Bt, Din]   compute dtype
    b1 = bias_ref[0:1, :hidden_pad]              # [1, H_pad]  f32
    b2 = bias_ref[1:2, :hidden_pad]              # [1, H_pad]  f32
    bh = bias_ref[2:3, :head_pad]                # [1, A_pad]  f32

    h1 = jnp.dot(x, w1_ref[...], preferred_element_type=jnp.float32)
    h1 = jnp.maximum(h1 + b1, 0.0)               # f32 elementwise
    h2 = jnp.dot(h1.astype(w2_ref.dtype), w2_ref[...],
                 preferred_element_type=jnp.float32)
    h2 = jnp.maximum(h2 + b2, 0.0)
    head = jnp.dot(h2.astype(wh_ref.dtype), wh_ref[...],
                   preferred_element_type=jnp.float32) + bh      # [Bt, A_pad] f32

    # Q-values before the mean subtraction; lane-dense store (A_pad mult of 128).
    o_ref[...] = (head[:, 0:1] + head).astype(o_ref.dtype)

    # Per-tile column sums over valid batch rows only (mask the padded tail).
    if batch % tile_b != 0:
        gid = lax.broadcasted_iota(jnp.int32, (tile_b, 1), 0) + i * tile_b
        head = jnp.where(gid < batch, head, 0.0)
    colsum = jnp.sum(head, axis=0, keepdims=True)                # [1, A_pad] f32
    sums_ref[...] = jnp.broadcast_to(colsum, sums_ref.shape)     # [8, A_pad]


def prepare_params(torch_params, compute_dtype=jnp.bfloat16):
    """Fuse / pad / pack PyTorch-layout params for the kernel (one-time cost).

    torch_params = (w1, b1, w2, b2, wa, ba, wv, bv), W: [out, in], b: [out].
    compute_dtype=bfloat16 is the MXU fast path on v5e/v6e/v7x; pass float32
    for a near-exact forward.
    """
    w1, b1, w2, b2, wa, ba, wv, bv = torch_params
    hidden, input_dim = w1.shape
    actions = wa.shape[0]
    hidden_pad = _round_up(hidden, 128)
    head_pad = _round_up(actions + 1, 128)        # value col + advantage cols
    bias_cols = max(hidden_pad, head_pad)

    def pad_to(a, shape):
        return jnp.pad(a, [(0, s - d) for s, d in zip(shape, a.shape)])

    w1_k = pad_to(w1.T, (input_dim, hidden_pad)).astype(compute_dtype)
    w2_k = pad_to(w2.T, (hidden_pad, hidden_pad)).astype(compute_dtype)
    # Fused head weights: column 0 = value head, columns 1..A = advantage head.
    wh_k = pad_to(jnp.concatenate([wv.T, wa.T], axis=1),
                  (hidden_pad, head_pad)).astype(compute_dtype)

    # All biases packed into a single lane-padded array -> one DMA (stays f32).
    bias_pack = jnp.zeros((3, bias_cols), jnp.float32)
    bias_pack = bias_pack.at[0, :hidden].set(b1)
    bias_pack = bias_pack.at[1, :hidden].set(b2)
    bias_pack = bias_pack.at[2, :actions + 1].set(jnp.concatenate([bv, ba]))

    dims = dict(input_dim=input_dim, hidden_pad=hidden_pad,
                head_pad=head_pad, actions=actions)
    return (w1_k, w2_k, wh_k, bias_pack, dims)


def ddqn_mlp_forward(x, prepared, *, batch_tile=1024):
    """Run the DDQN MLP forward pass with the Pallas kernel.  Returns f32 [B, A]."""
    w1, w2, wh, bias_pack, dims = prepared
    batch, input_dim = x.shape
    assert input_dim == dims["input_dim"]
    hidden_pad, head_pad = dims["hidden_pad"], dims["head_pad"]
    actions = dims["actions"]
    bias_cols = bias_pack.shape[1]

    # Batch tile: multiple of 8; large tiles amortize the ~0.35 us/grid-step
    # overhead (per-tile VMEM is a few MiB even on v7x's 64 MiB).
    tile_b = _round_up(min(batch_tile, _round_up(batch, 8)), 8)
    batch_pad = _round_up(batch, tile_b)
    n_tiles = batch_pad // tile_b

    x_p = x if batch_pad == batch else jnp.pad(x, ((0, batch_pad - batch), (0, 0)))
    # bf16 MXU operands (inputs quantized too) when compute_dtype=bf16.
    x_p = x_p.astype(w1.dtype)

    # bf16 output store halves output HBM writeback in the bf16 path; f32 path
    # keeps f32 output for accuracy.
    out_dtype = jnp.bfloat16 if w1.dtype == jnp.bfloat16 else jnp.float32

    kernel = functools.partial(
        ddqn_mlp_kernel, batch=batch, tile_b=tile_b,
        hidden_pad=hidden_pad, head_pad=head_pad)

    def call(single_buffer_weights):
        def resident(shape):
            index_map = lambda i: (0,) * len(shape)
            if single_buffer_weights:
                # Constant index_map -> double-buffering is pure VMEM waste.
                return pl.BlockSpec(shape, index_map,
                                    pipeline_mode=pl.Buffered(1))
            return pl.BlockSpec(shape, index_map)

        return pl.pallas_call(
            kernel,
            out_shape=(jax.ShapeDtypeStruct((batch_pad, head_pad), out_dtype),
                       jax.ShapeDtypeStruct((n_tiles * 8, head_pad), jnp.float32)),
            grid=(n_tiles,),
            in_specs=[
                pl.BlockSpec((tile_b, input_dim), lambda i: (i, 0)),  # x tiles
                resident((input_dim, hidden_pad)),                    # W1
                resident((hidden_pad, hidden_pad)),                   # W2
                resident((hidden_pad, head_pad)),                     # [Wv|Wa]
                resident((3, bias_cols)),                             # packed biases
            ],
            out_specs=(pl.BlockSpec((tile_b, head_pad), lambda i: (i, 0)),
                       pl.BlockSpec((8, head_pad), lambda i: (i, 0))),
            compiler_params=pltpu.CompilerParams(
                # All output blocks are disjoint per grid step -> safe to shard
                # batch tiles across v7x's two TensorCores.
                dimension_semantics=("parallel",)),
        )(x_p, w1, w2, wh, bias_pack)

    try:
        out, tile_sums = call(single_buffer_weights=True)
    except Exception:
        # Fallback for JAX builds where pipeline_mode=pl.Buffered(1) is not
        # supported on this path (perf-only difference).
        out, tile_sums = call(single_buffer_weights=False)

    # Full-batch advantage mean from the per-tile partial sums (f32), applied in
    # the wrapper.  Column 0 of the head is the value column; 1..A are advantages.
    adv_sum = tile_sums.reshape(n_tiles, 8, head_pad)[:, 0, :].sum(axis=0)
    adv_mean = adv_sum[1:actions + 1] * (1.0 / batch)               # [A] f32
    q = out[:batch, 1:actions + 1].astype(jnp.float32) - adv_mean[None, :]
    return q


def init_params(key, input_dim, hidden_dim, output_dim):
    """PyTorch nn.Linear-style init, PyTorch layout: W [out, in], b [out]."""
    ks = jax.random.split(key, 8)

    def lin(kw, kb, fan_in, fan_out):
        bound = 1.0 / float(fan_in) ** 0.5
        w = jax.random.uniform(kw, (fan_out, fan_in), jnp.float32, -bound, bound)
        b = jax.random.uniform(kb, (fan_out,), jnp.float32, -bound, bound)
        return w, b

    w1, b1 = lin(ks[0], ks[1], input_dim, hidden_dim)
    w2, b2 = lin(ks[2], ks[3], hidden_dim, hidden_dim)
    wa, ba = lin(ks[4], ks[5], hidden_dim, output_dim)
    wv, bv = lin(ks[6], ks[7], hidden_dim, 1)
    return (w1, b1, w2, b2, wa, ba, wv, bv)


def reference_forward(x, torch_params):
    """Pure-JAX reference mirroring the PyTorch module exactly (f32)."""
    w1, b1, w2, b2, wa, ba, wv, bv = torch_params
    h1 = jax.nn.relu(x @ w1.T + b1)
    h2 = jax.nn.relu(h1 @ w2.T + b2)
    adv = h2 @ wa.T + ba                                         # [B, A]
    val = h2 @ wv.T + bv                                         # [B, 1]
    adv_mean = jnp.mean(adv[None, ...], axis=1, keepdims=True)   # mean over BATCH
    return jnp.squeeze(val + adv - adv_mean, axis=0)             # [B, A]


if __name__ == "__main__":
    input_dim, hidden_dim, output_dim = 16, 32, 8
    key = jax.random.PRNGKey(0)
    k_x, k_x2, k_p = jax.random.split(key, 3)
    params = init_params(k_p, input_dim, hidden_dim, output_dim)

    # NOTE on tolerances: the XLA reference and the Mosaic kernel may resolve the
    # default f32 matmul precision differently on TPU (bf16-pass vs multi-pass),
    # so even the "f32" comparison uses a modest tolerance.

    # --- f32 path, single batch tile ---
    batch = 8
    x = jax.random.normal(k_x, (batch, input_dim), jnp.float32)
    ref = reference_forward(x, params)
    prep_f32 = prepare_params(params, compute_dtype=jnp.float32)
    out_f32 = jax.block_until_ready(ddqn_mlp_forward(x, prep_f32))
    assert out_f32.shape == (batch, output_dim)
    assert jnp.allclose(out_f32, ref, atol=2e-2, rtol=2e-2), "f32 kernel mismatch"

    # --- multi-tile batch grid with padded/masked tail (f32) ---
    batch2 = 20
    x2 = jax.random.normal(k_x2, (batch2, input_dim), jnp.float32)
    ref2 = reference_forward(x2, params)
    out2_f32 = jax.block_until_ready(ddqn_mlp_forward(x2, prep_f32, batch_tile=8))
    assert out2_f32.shape == (batch2, output_dim)
    assert jnp.allclose(out2_f32, ref2, atol=2e-2, rtol=2e-2), "tiled f32 mismatch"

    # --- default bf16 MXU path (inputs + weights bf16, f32 accumulate/combine,
    #     bf16 output store) ---
    prep_bf16 = prepare_params(params)   # compute_dtype defaults to bfloat16
    out2_bf16 = jax.block_until_ready(ddqn_mlp_forward(x2, prep_bf16, batch_tile=8))
    assert out2_bf16.shape == (batch2, output_dim)
    assert jnp.allclose(out2_bf16, ref2, atol=6e-2, rtol=6e-2), "bf16 kernel mismatch"

    print("KERNEL_OK")
</pallas_src>

<mosaic_0001>
module attributes {stable_mosaic.version = 11 : i64} {
  func.func @ddqn_mlp_kernel(%arg0: i32, %arg1: memref<8x16xf32, #tpu.memory_space<vmem>>, %arg2: memref<16x128xf32, #tpu.memory_space<vmem>>, %arg3: memref<128x128xf32, #tpu.memory_space<vmem>>, %arg4: memref<128x128xf32, #tpu.memory_space<vmem>>, %arg5: memref<3x128xf32, #tpu.memory_space<vmem>>, %arg6: memref<8x128xf32, #tpu.memory_space<vmem>>, %arg7: memref<8x128xf32, #tpu.memory_space<vmem>>) attributes {dimension_semantics = [#tpu.dimension_semantics<parallel>], iteration_bounds = array<i64: 1>, scalar_prefetch = 0 : i64, scratch_operands = 0 : i64, tpu.core_type = #tpu.core_type<tc>, window_params = [{transform_indices = @transform_0, window_bounds = array<i64: 8, 16>}, {pipeline_mode = #tpu.pipeline_mode<synchronous>, transform_indices = @transform_1, window_bounds = array<i64: 16, 128>}, {pipeline_mode = #tpu.pipeline_mode<synchronous>, transform_indices = @transform_2, window_bounds = array<i64: 128, 128>}, {pipeline_mode = #tpu.pipeline_mode<synchronous>, transform_indices = @transform_3, window_bounds = array<i64: 128, 128>}, {pipeline_mode = #tpu.pipeline_mode<synchronous>, transform_indices = @transform_4, window_bounds = array<i64: 3, 128>}, {transform_indices = @transform_5, window_bounds = array<i64: 8, 128>}, {transform_indices = @transform_6, window_bounds = array<i64: 8, 128>}]} {
    %c0 = arith.constant 0 : index
    %c0_0 = arith.constant 0 : index
    %0 = vector.load %arg1[%c0, %c0_0] : memref<8x16xf32, #tpu.memory_space<vmem>>, vector<8x16xf32>
    %c0_1 = arith.constant 0 : index
    %c0_2 = arith.constant 0 : index
    %1 = vector.load %arg5[%c0_1, %c0_2] : memref<3x128xf32, #tpu.memory_space<vmem>>, vector<1x128xf32>
    %c1 = arith.constant 1 : index
    %c0_3 = arith.constant 0 : index
    %2 = vector.load %arg5[%c1, %c0_3] : memref<3x128xf32, #tpu.memory_space<vmem>>, vector<1x128xf32>
    %c2 = arith.constant 2 : index
    %c0_4 = arith.constant 0 : index
    %3 = vector.load %arg5[%c2, %c0_4] : memref<3x128xf32, #tpu.memory_space<vmem>>, vector<1x128xf32>
    %c0_5 = arith.constant 0 : index
    %c0_6 = arith.constant 0 : index
    %4 = vector.load %arg2[%c0_5, %c0_6] : memref<16x128xf32, #tpu.memory_space<vmem>>, vector<16x128xf32>
    %cst = arith.constant dense<0.000000e+00> : vector<8x128xf32>
    %5 = tpu.matmul %0, %4, %cst {dimension_numbers = #tpu.dot_dimension_numbers<[1], [0], [0], [1], [0, 0, 1, 1], [], []>} : vector<8x16xf32>, vector<16x128xf32>, vector<8x128xf32> -> vector<8x128xf32>
    %6 = vector.broadcast %1 : vector<1x128xf32> to vector<8x128xf32>
    %7 = arith.addf %5, %6 : vector<8x128xf32>
    %cst_7 = arith.constant 0.000000e+00 : f32
    %8 = vector.broadcast %cst_7 : f32 to vector<8x128xf32>
    %9 = arith.maximumf %7, %8 : vector<8x128xf32>
    %c0_8 = arith.constant 0 : index
    %c0_9 = arith.constant 0 : index
    %10 = vector.load %arg3[%c0_8, %c0_9] : memref<128x128xf32, #tpu.memory_space<vmem>>, vector<128x128xf32>
    %cst_10 = arith.constant dense<0.000000e+00> : vector<8x128xf32>
    %11 = tpu.matmul %9, %10, %cst_10 {dimension_numbers = #tpu.dot_dimension_numbers<[1], [0], [0], [1], [0, 0, 1, 1], [], []>} : vector<8x128xf32>, vector<128x128xf32>, vector<8x128xf32> -> vector<8x128xf32>
    %12 = vector.broadcast %2 : vector<1x128xf32> to vector<8x128xf32>
    %13 = arith.addf %11, %12 : vector<8x128xf32>
    %cst_11 = arith.constant 0.000000e+00 : f32
    %14 = vector.broadcast %cst_11 : f32 to vector<8x128xf32>
    %15 = arith.maximumf %13, %14 : vector<8x128xf32>
    %c0_12 = arith.constant 0 : index
    %c0_13 = arith.constant 0 : index
    %16 = vector.load %arg4[%c0_12, %c0_13] : memref<128x128xf32, #tpu.memory_space<vmem>>, vector<128x128xf32>
    %cst_14 = arith.constant dense<0.000000e+00> : vector<8x128xf32>
    %17 = tpu.matmul %15, %16, %cst_14 {dimension_numbers = #tpu.dot_dimension_numbers<[1], [0], [0], [1], [0, 0, 1, 1], [], []>} : vector<8x128xf32>, vector<128x128xf32>, vector<8x128xf32> -> vector<8x128xf32>
    %18 = vector.broadcast %3 : vector<1x128xf32> to vector<8x128xf32>
    %19 = arith.addf %17, %18 : vector<8x128xf32>
    %20 = vector.extract_strided_slice %19 {offsets = [0, 0], sizes = [8, 1], strides = [1, 1]} : vector<8x128xf32> to vector<8x1xf32>
    %21 = vector.broadcast %20 : vector<8x1xf32> to vector<8x128xf32>
    %22 = arith.addf %21, %19 : vector<8x128xf32>
    %c0_15 = arith.constant 0 : index
    %c0_16 = arith.constant 0 : index
    %23 = vector.load %arg6[%c0_15, %c0_16] : memref<8x128xf32, #tpu.memory_space<vmem>>, vector<8x128xf32>
    tpu.vector_store %arg6[%c0_15, %c0_16], %22 {strides = array<i32>} : memref<8x128xf32, #tpu.memory_space<vmem>>, vector<8x128xf32>,
    %cst_17 = arith.constant dense<0.000000e+00> : vector<128xf32>
    %24 = vector.multi_reduction <add>, %19, %cst_17 [0] : vector<8x128xf32> to vector<128xf32>
    %25 = vector.shape_cast %24 : vector<128xf32> to vector<1x128xf32>
    %26 = vector.shape_cast %25 : vector<1x128xf32> to vector<1x128xf32>
    %27 = vector.broadcast %26 : vector<1x128xf32> to vector<8x128xf32>
    %c0_18 = arith.constant 0 : index
    %c0_19 = arith.constant 0 : index
    %28 = vector.load %arg7[%c0_18, %c0_19] : memref<8x128xf32, #tpu.memory_space<vmem>>, vector<8x128xf32>
    tpu.vector_store %arg7[%c0_18, %c0_19], %27 {strides = array<i32>} : memref<8x128xf32, #tpu.memory_space<vmem>>, vector<8x128xf32>,
    return
  }
  func.func @transform_0(%arg0: i32) -> (i32, i32) {
    %c0_i32 = arith.constant 0 : i32
    %c0_i32_0 = arith.constant 0 : i32
    return %arg0, %c0_i32 : i32, i32
  }
  func.func @transform_1(%arg0: i32) -> (i32, i32) {
    %c0_i32 = arith.constant 0 : i32
    %c0_i32_0 = arith.constant 0 : i32
    %c0_i32_1 = arith.constant 0 : i32
    return %c0_i32, %c0_i32_0 : i32, i32
  }
  func.func @transform_2(%arg0: i32) -> (i32, i32) {
    %c0_i32 = arith.constant 0 : i32
    %c0_i32_0 = arith.constant 0 : i32
    %c0_i32_1 = arith.constant 0 : i32
    return %c0_i32, %c0_i32_0 : i32, i32
  }
  func.func @transform_3(%arg0: i32) -> (i32, i32) {
    %c0_i32 = arith.constant 0 : i32
    %c0_i32_0 = arith.constant 0 : i32
    %c0_i32_1 = arith.constant 0 : i32
    return %c0_i32, %c0_i32_0 : i32, i32
  }
  func.func @transform_4(%arg0: i32) -> (i32, i32) {
    %c0_i32 = arith.constant 0 : i32
    %c0_i32_0 = arith.constant 0 : i32
    %c0_i32_1 = arith.constant 0 : i32
    return %c0_i32, %c0_i32_0 : i32, i32
  }
  func.func @transform_5(%arg0: i32) -> (i32, i32) {
    %c0_i32 = arith.constant 0 : i32
    %c0_i32_0 = arith.constant 0 : i32
    return %arg0, %c0_i32 : i32, i32
  }
  func.func @transform_6(%arg0: i32) -> (i32, i32) {
    %c0_i32 = arith.constant 0 : i32
    %c0_i32_0 = arith.constant 0 : i32
    return %arg0, %c0_i32 : i32, i32
  }
}

module attributes {stable_mosaic.version = 11 : i64} {
  func.func @ddqn_mlp_kernel(%arg0: i32, %arg1: memref<8x16xf32, #tpu.memory_space<vmem>>, %arg2: memref<16x128xf32, #tpu.memory_space<vmem>>, %arg3: memref<128x128xf32, #tpu.memory_space<vmem>>, %arg4: memref<128x128xf32, #tpu.memory_space<vmem>>, %arg5: memref<3x128xf32, #tpu.memory_space<vmem>>, %arg6: memref<8x128xf32, #tpu.memory_space<vmem>>, %arg7: memref<8x128xf32, #tpu.memory_space<vmem>>) attributes {dimension_semantics = [#tpu.dimension_semantics<parallel>], iteration_bounds = array<i64: 1>, scalar_prefetch = 0 : i64, scratch_operands = 0 : i64, tpu.core_type = #tpu.core_type<tc>, window_params = [{transform_indices = @transform_0, window_bounds = array<i64: 8, 16>}, {pipeline_mode = #tpu.pipeline_mode<synchronous>, transform_indices = @transform_1, window_bounds = array<i64: 16, 128>}, {pipeline_mode = #tpu.pipeline_mode<synchronous>, transform_indices = @transform_2, window_bounds = array<i64: 128, 128>}, {pipeline_mode = #tpu.pipeline_mode<synchronous>, transform_indices = @transform_3, window_bounds = array<i64: 128, 128>}, {pipeline_mode = #tpu.pipeline_mode<synchronous>, transform_indices = @transform_4, window_bounds = array<i64: 3, 128>}, {transform_indices = @transform_5, window_bounds = array<i64: 8, 128>}, {transform_indices = @transform_6, window_bounds = array<i64: 8, 128>}]} {
    %c0 = arith.constant 0 : index
    %c0_0 = arith.constant 0 : index
    %0 = vector.load %arg1[%c0, %c0_0] : memref<8x16xf32, #tpu.memory_space<vmem>>, vector<8x16xf32>
    %c0_1 = arith.constant 0 : index
    %c0_2 = arith.constant 0 : index
    %1 = vector.load %arg5[%c0_1, %c0_2] : memref<3x128xf32, #tpu.memory_space<vmem>>, vector<1x128xf32>
    %c1 = arith.constant 1 : index
    %c0_3 = arith.constant 0 : index
    %2 = vector.load %arg5[%c1, %c0_3] : memref<3x128xf32, #tpu.memory_space<vmem>>, vector<1x128xf32>
    %c2 = arith.constant 2 : index
    %c0_4 = arith.constant 0 : index
    %3 = vector.load %arg5[%c2, %c0_4] : memref<3x128xf32, #tpu.memory_space<vmem>>, vector<1x128xf32>
    %c0_5 = arith.constant 0 : index
    %c0_6 = arith.constant 0 : index
    %4 = vector.load %arg2[%c0_5, %c0_6] : memref<16x128xf32, #tpu.memory_space<vmem>>, vector<16x128xf32>
    %cst = arith.constant dense<0.000000e+00> : vector<8x128xf32>
    %5 = tpu.matmul %0, %4, %cst {dimension_numbers = #tpu.dot_dimension_numbers<[1], [0], [0], [1], [0, 0, 1, 1], [], []>} : vector<8x16xf32>, vector<16x128xf32>, vector<8x128xf32> -> vector<8x128xf32>
    %6 = vector.broadcast %1 : vector<1x128xf32> to vector<8x128xf32>
    %7 = arith.addf %5, %6 : vector<8x128xf32>
    %cst_7 = arith.constant 0.000000e+00 : f32
    %8 = vector.broadcast %cst_7 : f32 to vector<8x128xf32>
    %9 = arith.maximumf %7, %8 : vector<8x128xf32>
    %c0_8 = arith.constant 0 : index
    %c0_9 = arith.constant 0 : index
    %10 = vector.load %arg3[%c0_8, %c0_9] : memref<128x128xf32, #tpu.memory_space<vmem>>, vector<128x128xf32>
    %cst_10 = arith.constant dense<0.000000e+00> : vector<8x128xf32>
    %11 = tpu.matmul %9, %10, %cst_10 {dimension_numbers = #tpu.dot_dimension_numbers<[1], [0], [0], [1], [0, 0, 1, 1], [], []>} : vector<8x128xf32>, vector<128x128xf32>, vector<8x128xf32> -> vector<8x128xf32>
    %12 = vector.broadcast %2 : vector<1x128xf32> to vector<8x128xf32>
    %13 = arith.addf %11, %12 : vector<8x128xf32>
    %cst_11 = arith.constant 0.000000e+00 : f32
    %14 = vector.broadcast %cst_11 : f32 to vector<8x128xf32>
    %15 = arith.maximumf %13, %14 : vector<8x128xf32>
    %c0_12 = arith.constant 0 : index
    %c0_13 = arith.constant 0 : index
    %16 = vector.load %arg4[%c0_12, %c0_13] : memref<128x128xf32, #tpu.memory_space<vmem>>, vector<128x128xf32>
    %cst_14 = arith.constant dense<0.000000e+00> : vector<8x128xf32>
    %17 = tpu.matmul %15, %16, %cst_14 {dimension_numbers = #tpu.dot_dimension_numbers<[1], [0], [0], [1], [0, 0, 1, 1], [], []>} : vector<8x128xf32>, vector<128x128xf32>, vector<8x128xf32> -> vector<8x128xf32>
    %18 = vector.broadcast %3 : vector<1x128xf32> to vector<8x128xf32>
    %19 = arith.addf %17, %18 : vector<8x128xf32>
    %20 = vector.extract_strided_slice %19 {offsets = [0, 0], sizes = [8, 1], strides = [1, 1]} : vector<8x128xf32> to vector<8x1xf32>
    %21 = vector.broadcast %20 : vector<8x1xf32> to vector<8x128xf32>
    %22 = arith.addf %21, %19 : vector<8x128xf32>
    %c0_15 = arith.constant 0 : index
    %c0_16 = arith.constant 0 : index
    %23 = vector.load %arg6[%c0_15, %c0_16] : memref<8x128xf32, #tpu.memory_space<vmem>>, vector<8x128xf32>
    tpu.vector_store %arg6[%c0_15, %c0_16], %22 {strides = array<i32>} : memref<8x128xf32, #tpu.memory_space<vmem>>, vector<8x128xf32>,
    %cst_17 = arith.constant dense<0.000000e+00> : vector<128xf32>
    %24 = vector.multi_reduction <add>, %19, %cst_17 [0] : vector<8x128xf32> to vector<128xf32>
    %25 = vector.shape_cast %24 : vector<128xf32> to vector<1x128xf32>
    %26 = vector.shape_cast %25 : vector<1x128xf32> to vector<1x128xf32>
    %27 = vector.broadcast %26 : vector<1x128xf32> to vector<8x128xf32>
    %c0_18 = arith.constant 0 : index
    %c0_19 = arith.constant 0 : index
    %28 = vector.load %arg7[%c0_18, %c0_19] : memref<8x128xf32, #tpu.memory_space<vmem>>, vector<8x128xf32>
    tpu.vector_store %arg7[%c0_18, %c0_19], %27 {strides = array<i32>} : memref<8x128xf32, #tpu.memory_space<vmem>>, vector<8x128xf32>,
    return
  }
  func.func @transform_0(%arg0: i32) -> (i32, i32) {
    %c0_i32 = arith.constant 0 : i32
    %c0_i32_0 = arith.constant 0 : i32
    return %arg0, %c0_i32 : i32, i32
  }
  func.func @transform_1(%arg0: i32) -> (i32, i32) {
    %c0_i32 = arith.constant 0 : i32
    %c0_i32_0 = arith.constant 0 : i32
    %c0_i32_1 = arith.constant 0 : i32
    return %c0_i32, %c0_i32_0 : i32, i32
  }
  func.func @transform_2(%arg0: i32) -> (i32, i32) {
    %c0_i32 = arith.constant 0 : i32
    %c0_i32_0 = arith.constant 0 : i32
    %c0_i32_1 = arith.constant 0 : i32
    return %c0_i32, %c0_i32_0 : i32, i32
  }
  func.func @transform_3(%arg0: i32) -> (i32, i32) {
    %c0_i32 = arith.constant 0 : i32
    %c0_i32_0 = arith.constant 0 : i32
    %c0_i32_1 = arith.constant 0 : i32
    return %c0_i32, %c0_i32_0 : i32, i32
  }
  func.func @transform_4(%arg0: i32) -> (i32, i32) {
    %c0_i32 = arith.constant 0 : i32
    %c0_i32_0 = arith.constant 0 : i32
    %c0_i32_1 = arith.constant 0 : i32
    return %c0_i32, %c0_i32_0 : i32, i32
  }
  func.func @transform_5(%arg0: i32) -> (i32, i32) {
    %c0_i32 = arith.constant 0 : i32
    %c0_i32_0 = arith.constant 0 : i32
    return %arg0, %c0_i32 : i32, i32
  }
  func.func @transform_6(%arg0: i32) -> (i32, i32) {
    %c0_i32 = arith.constant 0 : i32
    %c0_i32_0 = arith.constant 0 : i32
    return %arg0, %c0_i32 : i32, i32
  }
}

</mosaic_0001>

<llo_original>
// kernel: tpu_custom_call.1
$region0: #{tpu_custom_call.1}
  #allocation0 [shape = 'u32[]', space=smem, size = 0x4, offset = 0x4, fixed_abs, tag = 'smem constant byte address 0x4 - core index']
  #allocation1 [shape = 'u32[144,128]{1,0:T(1,128)}', space=vmem, size = 0x12000, scoped, tag = 'internal scratch']
  %s0 = inlined_call_operand.hbm [shape: f32[8,16], index: 0, kind: input, shape index: {}]
  %s1 = inlined_call_operand.hbm [shape: f32[16,128], index: 1, kind: input, shape index: {}]
  %s2 = inlined_call_operand.hbm [shape: f32[128,128], index: 2, kind: input, shape index: {}]
  %s3 = inlined_call_operand.hbm [shape: f32[128,128], index: 3, kind: input, shape index: {}]
  %s4 = inlined_call_operand.vmem [shape: f32[3,128], index: 4, kind: input, shape index: {}]
  %s5 = inlined_call_operand.hbm [shape: f32[8,128], index: 5, kind: output, shape index: {0}]
  %s6 = inlined_call_operand.hbm [shape: f32[8,128], index: 6, kind: output, shape index: {1}]
  %7 = xla_tuple %s5, %s6
  %s8 = sld [smem:[#allocation0]]
  $region54: #{tpu_custom_call.1} parent=0
    _
  %s10 = ssub.s32 1, %s8
  %s11 = scalar_select 0, %s10, %s8
  $region1: #{tpu_custom_call.1} parent=0
    #allocation2 [shape = 'u8[4096]{0}', space=vmem, size = 0x1000, scoped, tag = 'input window, operand 0, single buffered']
    #allocation3 [shape = 's32[1]{0}', space=sflag, size = 0x4, scoped, tag = 'scoped memory for tpu_custom_call.1']
    #allocation4 [shape = 's32[1]{0}', space=sflag, size = 0x4, scoped, tag = 'scoped memory for tpu_custom_call.1']
    #allocation5 [shape = 'u8[8192]{0}', space=vmem, size = 0x2000, scoped, tag = 'input window, operand 1, single buffered']
    #allocation6 [shape = 's32[1]{0}', space=sflag, size = 0x4, scoped, tag = 'scoped memory for tpu_custom_call.1']
    #allocation7 [shape = 'u8[65536]{0}', space=vmem, size = 0x10000, scoped, tag = 'input window, operand 2, single buffered']
    #allocation8 [shape = 'u8[65536]{0}', space=vmem, size = 0x10000, scoped, tag = 'input window, operand 3, single buffered']
    #allocation9 [shape = 's32[1]{0}', space=sflag, size = 0x4, scoped, tag = 'scoped memory for tpu_custom_call.1']
    #allocation10 [shape = 'u8[4096]{0}', space=vmem, size = 0x1000, scoped, tag = 'output window, operand 0, single buffered']
    #allocation11 [shape = 'u8[4096]{0}', space=vmem, size = 0x1000, scoped, tag = 'output window, operand 1, single buffered']
    #allocation12 [shape = 's32[1]{0}', space=sflag, size = 0x4, scoped, tag = 'scoped memory for tpu_custom_call.1']
    %12 = vsyncpa [#allocation3], 0
    %13 = vsyncpa [#allocation6], 0
    %14 = vsyncpa [#allocation9], 0
    %15 = vsyncpa [#allocation4], 0
    %16 = vsyncpa [#allocation12], 0
    // Predicated region
    $region2: #{tpu_custom_call.1} parent=1 // pred_check
      _
    $region3: #{tpu_custom_call.1} parent=1 // pred_check_branch
      %18 = sbr.rel (0) target = $region5
    $region4: #{tpu_custom_call.1} parent=1 // pred_region
      %s20 = ssub.s32 128, 128
      %21 = vsyncadd [#allocation3], %s20
      %s23 = sshll.u32 [#allocation2], 4
      %s24 = int_to_ptr.vmem [resolvable:$true] %s23
      %26 = dma.hbm_to_vmem [thread:$0]  %s0, 128, %s24, [#allocation3]
    $region5: #{tpu_custom_call.1} parent=1 // pred_fallthru
      _
    // Predicated region
    $region6: #{tpu_custom_call.1} parent=1 // pred_check
      _
    $region7: #{tpu_custom_call.1} parent=1 // pred_check_branch
      %28 = sbr.rel (0) target = $region9
    $region8: #{tpu_custom_call.1} parent=1 // pred_region
      %s30 = ssub.s32 256, 256
      %31 = vsyncadd [#allocation6], %s30
      %s32 = sshll.u32 [#allocation5], 4
      %s33 = int_to_ptr.vmem [resolvable:$true] %s32
      %38 = dma.hbm_to_vmem [thread:$0]  %s1, 256, %s33, [#allocation6], 128, 128, 8
    $region9: #{tpu_custom_call.1} parent=1 // pred_fallthru
      _
    // Predicated region
    $region10: #{tpu_custom_call.1} parent=1 // pred_check
      _
    $region11: #{tpu_custom_call.1} parent=1 // pred_check_branch
      %40 = sbr.rel (0) target = $region13
    $region12: #{tpu_custom_call.1} parent=1 // pred_region
      %s42 = ssub.s32 2048, 2048
      %43 = vsyncadd [#allocation6], %s42
      %s44 = sshll.u32 [#allocation7], 4
      %s45 = int_to_ptr.vmem [resolvable:$true] %s44
      %50 = dma.hbm_to_vmem [thread:$0]  %s2, 2048, %s45, [#allocation6], 128, 128, 8
    $region13: #{tpu_custom_call.1} parent=1 // pred_fallthru
      _
    // Predicated region
    $region14: #{tpu_custom_call.1} parent=1 // pred_check
      _
    $region15: #{tpu_custom_call.1} parent=1 // pred_check_branch
      %52 = sbr.rel (0) target = $region17
    $region16: #{tpu_custom_call.1} parent=1 // pred_region
      %s54 = ssub.s32 2048, 2048
      %55 = vsyncadd [#allocation9], %s54
      %s56 = sshll.u32 [#allocation8], 4
      %s57 = int_to_ptr.vmem [resolvable:$true] %s56
      %62 = dma.hbm_to_vmem [thread:$0]  %s3, 2048, %s57, [#allocation9], 128, 128, 8
    $region17: #{tpu_custom_call.1} parent=1 // pred_fallthru
      _
    // Predicated region
    $region18: #{tpu_custom_call.1} parent=1 // pred_check
      _
    $region19: #{tpu_custom_call.1} parent=1 // pred_check_branch
      %64 = sbr.rel (0) target = $region21
    $region20: #{tpu_custom_call.1} parent=1 // pred_region
      _
    $region21: #{tpu_custom_call.1} parent=1 // pred_fallthru
      _
    // Predicated region
    $region22: #{tpu_custom_call.1} parent=1 // pred_check
      _
    $region23: #{tpu_custom_call.1} parent=1 // pred_check_branch
      %66 = sbr.rel (0) target = $region25
    $region24: #{tpu_custom_call.1} parent=1 // pred_region
      %67 = dma.done [#allocation3], 128
    $region25: #{tpu_custom_call.1} parent=1 // pred_fallthru
      _
    // Predicated region
    $region26: #{tpu_custom_call.1} parent=1 // pred_check
      _
    $region27: #{tpu_custom_call.1} parent=1 // pred_check_branch
      %69 = sbr.rel (0) target = $region29
    $region28: #{tpu_custom_call.1} parent=1 // pred_region
      %70 = dma.done [#allocation6], 256
    $region29: #{tpu_custom_call.1} parent=1 // pred_fallthru
      _
    // Predicated region
    $region30: #{tpu_custom_call.1} parent=1 // pred_check
      _
    $region31: #{tpu_custom_call.1} parent=1 // pred_check_branch
      %72 = sbr.rel (0) target = $region33
    $region32: #{tpu_custom_call.1} parent=1 // pred_region
      %73 = dma.done [#allocation6], 2048
    $region33: #{tpu_custom_call.1} parent=1 // pred_fallthru
      _
    // Predicated region
    $region34: #{tpu_custom_call.1} parent=1 // pred_check
      _
    $region35: #{tpu_custom_call.1} parent=1 // pred_check_branch
      %75 = sbr.rel (0) target = $region37
    $region36: #{tpu_custom_call.1} parent=1 // pred_region
      %76 = dma.done [#allocation9], 2048
    $region37: #{tpu_custom_call.1} parent=1 // pred_fallthru
      _
    %v77 = vld [vmem:[#allocation2] sm:$0xff]
    %v78 = vld [vmem:[%s4] sm:$0x1]
    %v79 = vld [vmem:[%s4 + $0x1] sm:$0x1]
    %v80 = vld [vmem:[%s4 + $0x2] sm:$0x1]
    %v81 = vld [vmem:[#allocation5] sm:$0xff]
    %v82 = vld [vmem:[#allocation5 + $0x8] sm:$0xff]
    %v83 = vlaneseq
    %v84 = vshrl.u32 %v83, 7
    %v85 = vsub.s32 0, %v84
    %v86 = vrot.slane %v78, %v85
    %vm87 = vcmask 130048
    %v89 = vsel %vm87, %v77, 0
    %91 = vmatprep.subr.mxu0 0.0
    %92 = vmatpush1.msra.mxu0 %v81
    %93 = vmatprep.subr.mxu0 0.0
    %94 = vmatpush1.msra.mxu0 %v82
    %95 = vmatprep.subr.mxu0 0.0
    %96 = vmatpush1.msra.mxu0 0.0
    %97 = vmatprep.subr.mxu0 0.0
    %98 = vmatpush1.msra.mxu0 0.0
    %99 = vmatprep.subr.mxu0 0.0
    %100 = vmatpush1.msra.mxu0 0.0
    %101 = vmatprep.subr.mxu0 0.0
    %102 = vmatpush1.msra.mxu0 0.0
    %103 = vmatprep.subr.mxu0 0.0
    %104 = vmatpush1.msra.mxu0 0.0
    %105 = vmatprep.subr.mxu0 0.0
    %106 = vmatpush1.msra.mxu0 0.0
    %107 = vmatprep.subr.mxu0 0.0
    %108 = vmatpush1.msra.mxu0 0.0
    %109 = vmatprep.subr.mxu0 0.0
    %110 = vmatpush1.msra.mxu0 0.0
    %111 = vmatprep.subr.mxu0 0.0
    %112 = vmatpush1.msra.mxu0 0.0
    %113 = vmatprep.subr.mxu0 0.0
    %114 = vmatpush1.msra.mxu0 0.0
    %115 = vmatprep.subr.mxu0 0.0
    %116 = vmatpush1.msra.mxu0 0.0
    %117 = vmatprep.subr.mxu0 0.0
    %118 = vmatpush1.msra.mxu0 0.0
    %119 = vmatprep.subr.mxu0 0.0
    %120 = vmatpush1.msra.mxu0 0.0
    %121 = vmatprep.subr.mxu0 0.0
    %122 = vmatpush1.msra.mxu0 0.0
    %123 = vmatprep.subr.mxu0 0.0
    %124 = vmatpush1.msra.mxu0 0.0
    %125 = vmatprep.subr.mxu0 0.0
    %126 = vmatpush1.msra.mxu0 0.0
    %127 = vmatprep.subr.mxu0 0.0
    %128 = vmatpush1.msra.mxu0 0.0
    %129 = vmatprep.subr.mxu0 0.0
    %130 = vmatpush1.msra.mxu0 0.0
    %131 = vmatprep.subr.mxu0 0.0
    %132 = vmatpush1.msra.mxu0 0.0
    %133 = vmatprep.subr.mxu0 0.0
    %134 = vmatpush1.msra.mxu0 0.0
    %135 = vmatprep.subr.mxu0 0.0
    %136 = vmatpush1.msra.mxu0 0.0
    %137 = vmatprep.subr.mxu0 0.0
    %138 = vmatpush1.msra.mxu0 0.0
    %139 = vmatprep.subr.mxu0 0.0
    %140 = vmatpush1.msra.mxu0 0.0
    %141 = vmatprep.subr.mxu0 0.0
    %142 = vmatpush1.msra.mxu0 0.0
    %143 = vmatprep.subr.mxu0 0.0
    %144 = vmatpush1.msra.mxu0 0.0
    %145 = vmatprep.subr.mxu0 0.0
    %146 = vmatpush1.msra.mxu0 0.0
    %147 = vmatprep.subr.mxu0 0.0
    %148 = vmatpush1.msra.mxu0 0.0
    %149 = vmatprep.subr.mxu0 0.0
    %150 = vmatpush1.msra.mxu0 0.0
    %151 = vmatprep.subr.mxu0 0.0
    %152 = vmatpush1.msra.mxu0 0.0
    %153 = vmatprep.subr.mxu0 0.0
    %154 = vmatpush1.msra.mxu0 0.0
    %155 = vmatprep.mubr.f32.mxu0 0.0
    %156 = vmatmul.mubr.f32.gmra.mrb[0].mxu0 %v89
    %v157 = vpop.f32.mrb[0].mxu0
    %v158 = vadd.f32 %v86, %v157
    %v159 = vpop.f32.mrb[0].mxu0
    %160 = vdwg.mxu0
    %v161 = vmax.f32 %v158, 0.0
    %v162 = vld [vmem:[#allocation7] sm:$0xff]
    %v163 = vld [vmem:[#allocation7 + $0x8] sm:$0xff]
    %v164 = vld [vmem:[#allocation7 + $0x10] sm:$0xff]
    %v165 = vld [vmem:[#allocation7 + $0x18] sm:$0xff]
    %v166 = vld [vmem:[#allocation7 + $0x20] sm:$0xff]
    %v167 = vld [vmem:[#allocation7 + $0x28] sm:$0xff]
    %v168 = vld [vmem:[#allocation7 + $0x30] sm:$0xff]
    %v169 = vld [vmem:[#allocation7 + $0x38] sm:$0xff]
    %v170 = vld [vmem:[#allocation7 + $0x40] sm:$0xff]
    %v171 = vld [vmem:[#allocation7 + $0x48] sm:$0xff]
    %v172 = vld [vmem:[#allocation7 + $0x50] sm:$0xff]
    %v173 = vld [vmem:[#allocation7 + $0x58] sm:$0xff]
    %v174 = vld [vmem:[#allocation7 + $0x60] sm:$0xff]
    %v175 = vld [vmem:[#allocation7 + $0x68] sm:$0xff]
    %v176 = vld [vmem:[#allocation7 + $0x70] sm:$0xff]
    %v177 = vld [vmem:[#allocation7 + $0x78] sm:$0xff]
    %v178 = vlaneseq
    %v179 = vshrl.u32 %v178, 7
    %v180 = vsub.s32 0, %v179
    %v181 = vrot.slane %v79, %v180
    %182 = vmatprep.subr.mxu0 0.0
    %183 = vmatpush1.msra.mxu0 %v162
    %184 = vmatprep.subr.mxu0 0.0
    %185 = vmatpush1.msra.mxu0 %v163
    %186 = vmatprep.subr.mxu0 0.0
    %187 = vmatpush1.msra.mxu0 %v164
    %188 = vmatprep.subr.mxu0 0.0
    %189 = vmatpush1.msra.mxu0 %v165
    %190 = vmatprep.subr.mxu0 0.0
    %191 = vmatpush1.msra.mxu0 %v166
    %192 = vmatprep.subr.mxu0 0.0
    %193 = vmatpush1.msra.mxu0 %v167
    %194 = vmatprep.subr.mxu0 0.0
    %195 = vmatpush1.msra.mxu0 %v168
    %196 = vmatprep.subr.mxu0 0.0
    %197 = vmatpush1.msra.mxu0 %v169
    %198 = vmatprep.subr.mxu0 0.0
    %199 = vmatpush1.msra.mxu0 %v170
    %200 = vmatprep.subr.mxu0 0.0
    %201 = vmatpush1.msra.mxu0 %v171
    %202 = vmatprep.subr.mxu0 0.0
    %203 = vmatpush1.msra.mxu0 %v172
    %204 = vmatprep.subr.mxu0 0.0
    %205 = vmatpush1.msra.mxu0 %v173
    %206 = vmatprep.subr.mxu0 0.0
    %207 = vmatpush1.msra.mxu0 %v174
    %208 = vmatprep.subr.mxu0 0.0
    %209 = vmatpush1.msra.mxu0 %v175
    %210 = vmatprep.subr.mxu0 0.0
    %211 = vmatpush1.msra.mxu0 %v176
    %212 = vmatprep.subr.mxu0 0.0
    %213 = vmatpush1.msra.mxu0 %v177
    %214 = vmatprep.subr.mxu0 0.0
    %215 = vmatpush1.msra.mxu0 0.0
    %216 = vmatprep.subr.mxu0 0.0
    %217 = vmatpush1.msra.mxu0 0.0
    %218 = vmatprep.subr.mxu0 0.0
    %219 = vmatpush1.msra.mxu0 0.0
    %220 = vmatprep.subr.mxu0 0.0
    %221 = vmatpush1.msra.mxu0 0.0
    %222 = vmatprep.subr.mxu0 0.0
    %223 = vmatpush1.msra.mxu0 0.0
    %224 = vmatprep.subr.mxu0 0.0
    %225 = vmatpush1.msra.mxu0 0.0
    %226 = vmatprep.subr.mxu0 0.0
    %227 = vmatpush1.msra.mxu0 0.0
    %228 = vmatprep.subr.mxu0 0.0
    %229 = vmatpush1.msra.mxu0 0.0
    %230 = vmatprep.subr.mxu0 0.0
    %231 = vmatpush1.msra.mxu0 0.0
    %232 = vmatprep.subr.mxu0 0.0
    %233 = vmatpush1.msra.mxu0 0.0
    %234 = vmatprep.subr.mxu0 0.0
    %235 = vmatpush1.msra.mxu0 0.0
    %236 = vmatprep.subr.mxu0 0.0
    %237 = vmatpush1.msra.mxu0 0.0
    %238 = vmatprep.subr.mxu0 0.0
    %239 = vmatpush1.msra.mxu0 0.0
    %240 = vmatprep.subr.mxu0 0.0
    %241 = vmatpush1.msra.mxu0 0.0
    %242 = vmatprep.subr.mxu0 0.0
    %243 = vmatpush1.msra.mxu0 0.0
    %244 = vmatprep.subr.mxu0 0.0
    %245 = vmatpush1.msra.mxu0 0.0
    %246 = vmatprep.mubr.f32.mxu0 0.0
    %247 = vmatmul.mubr.f32.gmra.mrb[0].mxu0 %v161
    %v248 = vpop.f32.mrb[0].mxu0
    %v249 = vadd.f32 %v181, %v248
    %v250 = vpop.f32.mrb[0].mxu0
    %251 = vdwg.mxu0
    %v252 = vmax.f32 %v249, 0.0
    %v253 = vld [vmem:[#allocation8] sm:$0xff]
    %v254 = vld [vmem:[#allocation8 + $0x8] sm:$0xff]
    %v255 = vld [vmem:[#allocation8 + $0x10] sm:$0xff]
    %v256 = vld [vmem:[#allocation8 + $0x18] sm:$0xff]
    %v257 = vld [vmem:[#allocation8 + $0x20] sm:$0xff]
    %v258 = vld [vmem:[#allocation8 + $0x28] sm:$0xff]
    %v259 = vld [vmem:[#allocation8 + $0x30] sm:$0xff]
    %v260 = vld [vmem:[#allocation8 + $0x38] sm:$0xff]
    %v261 = vld [vmem:[#allocation8 + $0x40] sm:$0xff]
    %v262 = vld [vmem:[#allocation8 + $0x48] sm:$0xff]
    %v263 = vld [vmem:[#allocation8 + $0x50] sm:$0xff]
    %v264 = vld [vmem:[#allocation8 + $0x58] sm:$0xff]
    %v265 = vld [vmem:[#allocation8 + $0x60] sm:$0xff]
    %v266 = vld [vmem:[#allocation8 + $0x68] sm:$0xff]
    %v267 = vld [vmem:[#allocation8 + $0x70] sm:$0xff]
    %v268 = vld [vmem:[#allocation8 + $0x78] sm:$0xff]
    %v269 = vlaneseq
    %v270 = vshrl.u32 %v269, 7
    %v271 = vsub.s32 0, %v270
    %v272 = vrot.slane %v80, %v271
    %273 = vmatprep.subr.mxu0 0.0
    %274 = vmatpush1.msra.mxu0 %v253
    %275 = vmatprep.subr.mxu0 0.0
    %276 = vmatpush1.msra.mxu0 %v254
    %277 = vmatprep.subr.mxu0 0.0
    %278 = vmatpush1.msra.mxu0 %v255
    %279 = vmatprep.subr.mxu0 0.0
    %280 = vmatpush1.msra.mxu0 %v256
    %281 = vmatprep.subr.mxu0 0.0
    %282 = vmatpush1.msra.mxu0 %v257
    %283 = vmatprep.subr.mxu0 0.0
    %284 = vmatpush1.msra.mxu0 %v258
    %285 = vmatprep.subr.mxu0 0.0
    %286 = vmatpush1.msra.mxu0 %v259
    %287 = vmatprep.subr.mxu0 0.0
    %288 = vmatpush1.msra.mxu0 %v260
    %289 = vmatprep.subr.mxu0 0.0
    %290 = vmatpush1.msra.mxu0 %v261
    %291 = vmatprep.subr.mxu0 0.0
    %292 = vmatpush1.msra.mxu0 %v262
    %293 = vmatprep.subr.mxu0 0.0
    %294 = vmatpush1.msra.mxu0 %v263
    %295 = vmatprep.subr.mxu0 0.0
    %296 = vmatpush1.msra.mxu0 %v264
    %297 = vmatprep.subr.mxu0 0.0
    %298 = vmatpush1.msra.mxu0 %v265
    %299 = vmatprep.subr.mxu0 0.0
    %300 = vmatpush1.msra.mxu0 %v266
    %301 = vmatprep.subr.mxu0 0.0
    %302 = vmatpush1.msra.mxu0 %v267
    %303 = vmatprep.subr.mxu0 0.0
    %304 = vmatpush1.msra.mxu0 %v268
    %305 = vmatprep.subr.mxu0 0.0
    %306 = vmatpush1.msra.mxu0 0.0
    %307 = vmatprep.subr.mxu0 0.0
    %308 = vmatpush1.msra.mxu0 0.0
    %309 = vmatprep.subr.mxu0 0.0
    %310 = vmatpush1.msra.mxu0 0.0
    %311 = vmatprep.subr.mxu0 0.0
    %312 = vmatpush1.msra.mxu0 0.0
    %313 = vmatprep.subr.mxu0 0.0
    %314 = vmatpush1.msra.mxu0 0.0
    %315 = vmatprep.subr.mxu0 0.0
    %316 = vmatpush1.msra.mxu0 0.0
    %317 = vmatprep.subr.mxu0 0.0
    %318 = vmatpush1.msra.mxu0 0.0
    %319 = vmatprep.subr.mxu0 0.0
    %320 = vmatpush1.msra.mxu0 0.0
    %321 = vmatprep.subr.mxu0 0.0
    %322 = vmatpush1.msra.mxu0 0.0
    %323 = vmatprep.subr.mxu0 0.0
    %324 = vmatpush1.msra.mxu0 0.0
    %325 = vmatprep.subr.mxu0 0.0
    %326 = vmatpush1.msra.mxu0 0.0
    %327 = vmatprep.subr.mxu0 0.0
    %328 = vmatpush1.msra.mxu0 0.0
    %329 = vmatprep.subr.mxu0 0.0
    %330 = vmatpush1.msra.mxu0 0.0
    %331 = vmatprep.subr.mxu0 0.0
    %332 = vmatpush1.msra.mxu0 0.0
    %333 = vmatprep.subr.mxu0 0.0
    %334 = vmatpush1.msra.mxu0 0.0
    %335 = vmatprep.subr.mxu0 0.0
    %336 = vmatpush1.msra.mxu0 0.0
    %337 = vmatprep.mubr.f32.mxu0 0.0
    %338 = vmatmul.mubr.f32.gmra.mrb[0].mxu0 %v252
    %v339 = vpop.f32.mrb[0].mxu0
    %v340 = vadd.f32 %v272, %v339
    %v341 = vpop.f32.mrb[0].mxu0
    %342 = vdwg.mxu0
    %344 = vset.pattern.permute.xlu0 0
    %345 = vperm.xlu0 %344, %v340
    %v346 = vpop.permute.xlu0 %345
    %v348 = vadd.f32 %v346, %v340
    %349 = vst [vmem:[#allocation10] sm:$0xff] %v348
    %v350 = vrot.slane %v340, 4
    %v351 = vadd.f32 %v340, %v350
    %v352 = vrot.slane %v351, 2
    %v353 = vadd.f32 %v351, %v352
    %v354 = vrot.slane %v353, 1
    %v355 = vadd.f32 %v353, %v354
    %356 = vst [vmem:[#allocation11] sm:$0xff] %v355
    // Predicated region
    $region38: #{tpu_custom_call.1} parent=1 // pred_check
      _
    $region39: #{tpu_custom_call.1} parent=1 // pred_check_branch
      %358 = sbr.rel (0) target = $region41
    $region40: #{tpu_custom_call.1} parent=1 // pred_region
      %s360 = ssub.s32 128, 128
      %361 = vsyncadd [#allocation4], %s360
      %s363 = sshll.u32 [#allocation10], 4
      %s364 = int_to_ptr.vmem [resolvable:$true] %s363
      %366 = dma.vmem_to_hbm [thread:$0]  %s364, 128, %s5, [#allocation4]
    $region41: #{tpu_custom_call.1} parent=1 // pred_fallthru
      _
    // Predicated region
    $region42: #{tpu_custom_call.1} parent=1 // pred_check
      _
    $region43: #{tpu_custom_call.1} parent=1 // pred_check_branch
      %368 = sbr.rel (0) target = $region45
    $region44: #{tpu_custom_call.1} parent=1 // pred_region
      %s370 = ssub.s32 128, 128
      %371 = vsyncadd [#allocation12], %s370
      %s373 = sshll.u32 [#allocation11], 4
      %s374 = int_to_ptr.vmem [resolvable:$true] %s373
      %376 = dma.vmem_to_hbm [thread:$0]  %s374, 128, %s6, [#allocation12]
    $region45: #{tpu_custom_call.1} parent=1 // pred_fallthru
      _
    // Predicated region
    $region46: #{tpu_custom_call.1} parent=1 // pred_check
      _
    $region47: #{tpu_custom_call.1} parent=1 // pred_check_branch
      %378 = sbr.rel (0) target = $region49
    $region48: #{tpu_custom_call.1} parent=1 // pred_region
      %379 = dma.done [#allocation4], 128
    $region49: #{tpu_custom_call.1} parent=1 // pred_fallthru
      _
    // Predicated region
    $region50: #{tpu_custom_call.1} parent=1 // pred_check
      _
    $region51: #{tpu_custom_call.1} parent=1 // pred_check_branch
      %381 = sbr.rel (0) target = $region53
    $region52: #{tpu_custom_call.1} parent=1 // pred_region
      %382 = dma.done [#allocation12], 128
    $region53: #{tpu_custom_call.1} parent=1 // pred_fallthru
      _
    %383 = vsyncpa [#allocation3], 1
    %384 = vsyncpa [#allocation6], 1
    %385 = vsyncpa [#allocation9], 1
    %386 = vsyncpa [#allocation4], 1
    %387 = vsyncpa [#allocation12], 1

// kernel: tpu_custom_call.1
$region0: #{tpu_custom_call.1}
  #allocation0 [shape = 'u32[]', space=smem, size = 0x4, offset = 0x4, fixed_abs, tag = 'smem constant byte address 0x4 - core index']
  #allocation1 [shape = 'u32[144,128]{1,0:T(1,128)}', space=vmem, size = 0x12000, scoped, tag = 'internal scratch']
  %s0 = inlined_call_operand.hbm [shape: f32[8,16], index: 0, kind: input, shape index: {}]
  %s1 = inlined_call_operand.hbm [shape: f32[16,128], index: 1, kind: input, shape index: {}]
  %s2 = inlined_call_operand.hbm [shape: f32[128,128], index: 2, kind: input, shape index: {}]
  %s3 = inlined_call_operand.hbm [shape: f32[128,128], index: 3, kind: input, shape index: {}]
  %s4 = inlined_call_operand.vmem [shape: f32[3,128], index: 4, kind: input, shape index: {}]
  %s5 = inlined_call_operand.hbm [shape: f32[8,128], index: 5, kind: output, shape index: {0}]
  %s6 = inlined_call_operand.hbm [shape: f32[8,128], index: 6, kind: output, shape index: {1}]
  %7 = xla_tuple %s5, %s6
  %s8 = sld [smem:[#allocation0]]
  $region54: #{tpu_custom_call.1} parent=0
    _
  %s10 = ssub.s32 1, %s8
  %s11 = scalar_select 0, %s10, %s8
  $region1: #{tpu_custom_call.1} parent=0
    #allocation2 [shape = 'u8[4096]{0}', space=vmem, size = 0x1000, scoped, tag = 'input window, operand 0, single buffered']
    #allocation3 [shape = 's32[1]{0}', space=sflag, size = 0x4, scoped, tag = 'scoped memory for tpu_custom_call.1']
    #allocation4 [shape = 's32[1]{0}', space=sflag, size = 0x4, scoped, tag = 'scoped memory for tpu_custom_call.1']
    #allocation5 [shape = 'u8[8192]{0}', space=vmem, size = 0x2000, scoped, tag = 'input window, operand 1, single buffered']
    #allocation6 [shape = 's32[1]{0}', space=sflag, size = 0x4, scoped, tag = 'scoped memory for tpu_custom_call.1']
    #allocation7 [shape = 'u8[65536]{0}', space=vmem, size = 0x10000, scoped, tag = 'input window, operand 2, single buffered']
    #allocation8 [shape = 'u8[65536]{0}', space=vmem, size = 0x10000, scoped, tag = 'input window, operand 3, single buffered']
    #allocation9 [shape = 's32[1]{0}', space=sflag, size = 0x4, scoped, tag = 'scoped memory for tpu_custom_call.1']
    #allocation10 [shape = 'u8[4096]{0}', space=vmem, size = 0x1000, scoped, tag = 'output window, operand 0, single buffered']
    #allocation11 [shape = 'u8[4096]{0}', space=vmem, size = 0x1000, scoped, tag = 'output window, operand 1, single buffered']
    #allocation12 [shape = 's32[1]{0}', space=sflag, size = 0x4, scoped, tag = 'scoped memory for tpu_custom_call.1']
    %12 = vsyncpa [#allocation3], 0
    %13 = vsyncpa [#allocation6], 0
    %14 = vsyncpa [#allocation9], 0
    %15 = vsyncpa [#allocation4], 0
    %16 = vsyncpa [#allocation12], 0
    // Predicated region
    $region2: #{tpu_custom_call.1} parent=1 // pred_check
      _
    $region3: #{tpu_custom_call.1} parent=1 // pred_check_branch
      %18 = sbr.rel (0) target = $region5
    $region4: #{tpu_custom_call.1} parent=1 // pred_region
      %s20 = ssub.s32 128, 128
      %21 = vsyncadd [#allocation3], %s20
      %s23 = sshll.u32 [#allocation2], 4
      %s24 = int_to_ptr.vmem [resolvable:$true] %s23
      %26 = dma.hbm_to_vmem [thread:$0]  %s0, 128, %s24, [#allocation3]
    $region5: #{tpu_custom_call.1} parent=1 // pred_fallthru
      _
    // Predicated region
    $region6: #{tpu_custom_call.1} parent=1 // pred_check
      _
    $region7: #{tpu_custom_call.1} parent=1 // pred_check_branch
      %28 = sbr.rel (0) target = $region9
    $region8: #{tpu_custom_call.1} parent=1 // pred_region
      %s30 = ssub.s32 256, 256
      %31 = vsyncadd [#allocation6], %s30
      %s32 = sshll.u32 [#allocation5], 4
      %s33 = int_to_ptr.vmem [resolvable:$true] %s32
      %38 = dma.hbm_to_vmem [thread:$0]  %s1, 256, %s33, [#allocation6], 128, 128, 8
    $region9: #{tpu_custom_call.1} parent=1 // pred_fallthru
      _
    // Predicated region
    $region10: #{tpu_custom_call.1} parent=1 // pred_check
      _
    $region11: #{tpu_custom_call.1} parent=1 // pred_check_branch
      %40 = sbr.rel (0) target = $region13
    $region12: #{tpu_custom_call.1} parent=1 // pred_region
      %s42 = ssub.s32 2048, 2048
      %43 = vsyncadd [#allocation6], %s42
      %s44 = sshll.u32 [#allocation7], 4
      %s45 = int_to_ptr.vmem [resolvable:$true] %s44
      %50 = dma.hbm_to_vmem [thread:$0]  %s2, 2048, %s45, [#allocation6], 128, 128, 8
    $region13: #{tpu_custom_call.1} parent=1 // pred_fallthru
      _
    // Predicated region
    $region14: #{tpu_custom_call.1} parent=1 // pred_check
      _
    $region15: #{tpu_custom_call.1} parent=1 // pred_check_branch
      %52 = sbr.rel (0) target = $region17
    $region16: #{tpu_custom_call.1} parent=1 // pred_region
      %s54 = ssub.s32 2048, 2048
      %55 = vsyncadd [#allocation9], %s54
      %s56 = sshll.u32 [#allocation8], 4
      %s57 = int_to_ptr.vmem [resolvable:$true] %s56
      %62 = dma.hbm_to_vmem [thread:$0]  %s3, 2048, %s57, [#allocation9], 128, 128, 8
    $region17: #{tpu_custom_call.1} parent=1 // pred_fallthru
      _
    // Predicated region
    $region18: #{tpu_custom_call.1} parent=1 // pred_check
      _
    $region19: #{tpu_custom_call.1} parent=1 // pred_check_branch
      %64 = sbr.rel (0) target = $region21
    $region20: #{tpu_custom_call.1} parent=1 // pred_region
      _
    $region21: #{tpu_custom_call.1} parent=1 // pred_fallthru
      _
    // Predicated region
    $region22: #{tpu_custom_call.1} parent=1 // pred_check
      _
    $region23: #{tpu_custom_call.1} parent=1 // pred_check_branch
      %66 = sbr.rel (0) target = $region25
    $region24: #{tpu_custom_call.1} parent=1 // pred_region
      %67 = dma.done [#allocation3], 128
    $region25: #{tpu_custom_call.1} parent=1 // pred_fallthru
      _
    // Predicated region
    $region26: #{tpu_custom_call.1} parent=1 // pred_check
      _
    $region27: #{tpu_custom_call.1} parent=1 // pred_check_branch
      %69 = sbr.rel (0) target = $region29
    $region28: #{tpu_custom_call.1} parent=1 // pred_region
      %70 = dma.done [#allocation6], 256
    $region29: #{tpu_custom_call.1} parent=1 // pred_fallthru
      _
    // Predicated region
    $region30: #{tpu_custom_call.1} parent=1 // pred_check
      _
    $region31: #{tpu_custom_call.1} parent=1 // pred_check_branch
      %72 = sbr.rel (0) target = $region33
    $region32: #{tpu_custom_call.1} parent=1 // pred_region
      %73 = dma.done [#allocation6], 2048
    $region33: #{tpu_custom_call.1} parent=1 // pred_fallthru
      _
    // Predicated region
    $region34: #{tpu_custom_call.1} parent=1 // pred_check
      _
    $region35: #{tpu_custom_call.1} parent=1 // pred_check_branch
      %75 = sbr.rel (0) target = $region37
    $region36: #{tpu_custom_call.1} parent=1 // pred_region
      %76 = dma.done [#allocation9], 2048
    $region37: #{tpu_custom_call.1} parent=1 // pred_fallthru
      _
    %v77 = vld [vmem:[#allocation2] sm:$0xff]
    %v78 = vld [vmem:[%s4] sm:$0x1]
    %v79 = vld [vmem:[%s4 + $0x1] sm:$0x1]
    %v80 = vld [vmem:[%s4 + $0x2] sm:$0x1]
    %v81 = vld [vmem:[#allocation5] sm:$0xff]
    %v82 = vld [vmem:[#allocation5 + $0x8] sm:$0xff]
    %v83 = vlaneseq
    %v84 = vshrl.u32 %v83, 7
    %v85 = vsub.s32 0, %v84
    %v86 = vrot.slane %v78, %v85
    %vm87 = vcmask 130048
    %v89 = vsel %vm87, %v77, 0
    %91 = vmatprep.subr.mxu0 0.0
    %92 = vmatpush1.msra.mxu0 %v81
    %93 = vmatprep.subr.mxu0 0.0
    %94 = vmatpush1.msra.mxu0 %v82
    %95 = vmatprep.subr.mxu0 0.0
    %96 = vmatpush1.msra.mxu0 0.0
    %97 = vmatprep.subr.mxu0 0.0
    %98 = vmatpush1.msra.mxu0 0.0
    %99 = vmatprep.subr.mxu0 0.0
    %100 = vmatpush1.msra.mxu0 0.0
    %101 = vmatprep.subr.mxu0 0.0
    %102 = vmatpush1.msra.mxu0 0.0
    %103 = vmatprep.subr.mxu0 0.0
    %104 = vmatpush1.msra.mxu0 0.0
    %105 = vmatprep.subr.mxu0 0.0
    %106 = vmatpush1.msra.mxu0 0.0
    %107 = vmatprep.subr.mxu0 0.0
    %108 = vmatpush1.msra.mxu0 0.0
    %109 = vmatprep.subr.mxu0 0.0
    %110 = vmatpush1.msra.mxu0 0.0
    %111 = vmatprep.subr.mxu0 0.0
    %112 = vmatpush1.msra.mxu0 0.0
    %113 = vmatprep.subr.mxu0 0.0
    %114 = vmatpush1.msra.mxu0 0.0
    %115 = vmatprep.subr.mxu0 0.0
    %116 = vmatpush1.msra.mxu0 0.0
    %117 = vmatprep.subr.mxu0 0.0
    %118 = vmatpush1.msra.mxu0 0.0
    %119 = vmatprep.subr.mxu0 0.0
    %120 = vmatpush1.msra.mxu0 0.0
    %121 = vmatprep.subr.mxu0 0.0
    %122 = vmatpush1.msra.mxu0 0.0
    %123 = vmatprep.subr.mxu0 0.0
    %124 = vmatpush1.msra.mxu0 0.0
    %125 = vmatprep.subr.mxu0 0.0
    %126 = vmatpush1.msra.mxu0 0.0
    %127 = vmatprep.subr.mxu0 0.0
    %128 = vmatpush1.msra.mxu0 0.0
    %129 = vmatprep.subr.mxu0 0.0
    %130 = vmatpush1.msra.mxu0 0.0
    %131 = vmatprep.subr.mxu0 0.0
    %132 = vmatpush1.msra.mxu0 0.0
    %133 = vmatprep.subr.mxu0 0.0
    %134 = vmatpush1.msra.mxu0 0.0
    %135 = vmatprep.subr.mxu0 0.0
    %136 = vmatpush1.msra.mxu0 0.0
    %137 = vmatprep.subr.mxu0 0.0
    %138 = vmatpush1.msra.mxu0 0.0
    %139 = vmatprep.subr.mxu0 0.0
    %140 = vmatpush1.msra.mxu0 0.0
    %141 = vmatprep.subr.mxu0 0.0
    %142 = vmatpush1.msra.mxu0 0.0
    %143 = vmatprep.subr.mxu0 0.0
    %144 = vmatpush1.msra.mxu0 0.0
    %145 = vmatprep.subr.mxu0 0.0
    %146 = vmatpush1.msra.mxu0 0.0
    %147 = vmatprep.subr.mxu0 0.0
    %148 = vmatpush1.msra.mxu0 0.0
    %149 = vmatprep.subr.mxu0 0.0
    %150 = vmatpush1.msra.mxu0 0.0
    %151 = vmatprep.subr.mxu0 0.0
    %152 = vmatpush1.msra.mxu0 0.0
    %153 = vmatprep.subr.mxu0 0.0
    %154 = vmatpush1.msra.mxu0 0.0
    %155 = vmatprep.mubr.f32.mxu0 0.0
    %156 = vmatmul.mubr.f32.gmra.mrb[0].mxu0 %v89
    %v157 = vpop.f32.mrb[0].mxu0
    %v158 = vadd.f32 %v86, %v157
    %v159 = vpop.f32.mrb[0].mxu0
    %160 = vdwg.mxu0
    %v161 = vmax.f32 %v158, 0.0
    %v162 = vld [vmem:[#allocation7] sm:$0xff]
    %v163 = vld [vmem:[#allocation7 + $0x8] sm:$0xff]
    %v164 = vld [vmem:[#allocation7 + $0x10] sm:$0xff]
    %v165 = vld [vmem:[#allocation7 + $0x18] sm:$0xff]
    %v166 = vld [vmem:[#allocation7 + $0x20] sm:$0xff]
    %v167 = vld [vmem:[#allocation7 + $0x28] sm:$0xff]
    %v168 = vld [vmem:[#allocation7 + $0x30] sm:$0xff]
    %v169 = vld [vmem:[#allocation7 + $0x38] sm:$0xff]
    %v170 = vld [vmem:[#allocation7 + $0x40] sm:$0xff]
    %v171 = vld [vmem:[#allocation7 + $0x48] sm:$0xff]
    %v172 = vld [vmem:[#allocation7 + $0x50] sm:$0xff]
    %v173 = vld [vmem:[#allocation7 + $0x58] sm:$0xff]
    %v174 = vld [vmem:[#allocation7 + $0x60] sm:$0xff]
    %v175 = vld [vmem:[#allocation7 + $0x68] sm:$0xff]
    %v176 = vld [vmem:[#allocation7 + $0x70] sm:$0xff]
    %v177 = vld [vmem:[#allocation7 + $0x78] sm:$0xff]
    %v178 = vlaneseq
    %v179 = vshrl.u32 %v178, 7
    %v180 = vsub.s32 0, %v179
    %v181 = vrot.slane %v79, %v180
    %182 = vmatprep.subr.mxu0 0.0
    %183 = vmatpush1.msra.mxu0 %v162
    %184 = vmatprep.subr.mxu0 0.0
    %185 = vmatpush1.msra.mxu0 %v163
    %186 = vmatprep.subr.mxu0 0.0
    %187 = vmatpush1.msra.mxu0 %v164
    %188 = vmatprep.subr.mxu0 0.0
    %189 = vmatpush1.msra.mxu0 %v165
    %190 = vmatprep.subr.mxu0 0.0
    %191 = vmatpush1.msra.mxu0 %v166
    %192 = vmatprep.subr.mxu0 0.0
    %193 = vmatpush1.msra.mxu0 %v167
    %194 = vmatprep.subr.mxu0 0.0
    %195 = vmatpush1.msra.mxu0 %v168
    %196 = vmatprep.subr.mxu0 0.0
    %197 = vmatpush1.msra.mxu0 %v169
    %198 = vmatprep.subr.mxu0 0.0
    %199 = vmatpush1.msra.mxu0 %v170
    %200 = vmatprep.subr.mxu0 0.0
    %201 = vmatpush1.msra.mxu0 %v171
    %202 = vmatprep.subr.mxu0 0.0
    %203 = vmatpush1.msra.mxu0 %v172
    %204 = vmatprep.subr.mxu0 0.0
    %205 = vmatpush1.msra.mxu0 %v173
    %206 = vmatprep.subr.mxu0 0.0
    %207 = vmatpush1.msra.mxu0 %v174
    %208 = vmatprep.subr.mxu0 0.0
    %209 = vmatpush1.msra.mxu0 %v175
    %210 = vmatprep.subr.mxu0 0.0
    %211 = vmatpush1.msra.mxu0 %v176
    %212 = vmatprep.subr.mxu0 0.0
    %213 = vmatpush1.msra.mxu0 %v177
    %214 = vmatprep.subr.mxu0 0.0
    %215 = vmatpush1.msra.mxu0 0.0
    %216 = vmatprep.subr.mxu0 0.0
    %217 = vmatpush1.msra.mxu0 0.0
    %218 = vmatprep.subr.mxu0 0.0
    %219 = vmatpush1.msra.mxu0 0.0
    %220 = vmatprep.subr.mxu0 0.0
    %221 = vmatpush1.msra.mxu0 0.0
    %222 = vmatprep.subr.mxu0 0.0
    %223 = vmatpush1.msra.mxu0 0.0
    %224 = vmatprep.subr.mxu0 0.0
    %225 = vmatpush1.msra.mxu0 0.0
    %226 = vmatprep.subr.mxu0 0.0
    %227 = vmatpush1.msra.mxu0 0.0
    %228 = vmatprep.subr.mxu0 0.0
    %229 = vmatpush1.msra.mxu0 0.0
    %230 = vmatprep.subr.mxu0 0.0
    %231 = vmatpush1.msra.mxu0 0.0
    %232 = vmatprep.subr.mxu0 0.0
    %233 = vmatpush1.msra.mxu0 0.0
    %234 = vmatprep.subr.mxu0 0.0
    %235 = vmatpush1.msra.mxu0 0.0
    %236 = vmatprep.subr.mxu0 0.0
    %237 = vmatpush1.msra.mxu0 0.0
    %238 = vmatprep.subr.mxu0 0.0
    %239 = vmatpush1.msra.mxu0 0.0
    %240 = vmatprep.subr.mxu0 0.0
    %241 = vmatpush1.msra.mxu0 0.0
    %242 = vmatprep.subr.mxu0 0.0
    %243 = vmatpush1.msra.mxu0 0.0
    %244 = vmatprep.subr.mxu0 0.0
    %245 = vmatpush1.msra.mxu0 0.0
    %246 = vmatprep.mubr.f32.mxu0 0.0
    %247 = vmatmul.mubr.f32.gmra.mrb[0].mxu0 %v161
    %v248 = vpop.f32.mrb[0].mxu0
    %v249 = vadd.f32 %v181, %v248
    %v250 = vpop.f32.mrb[0].mxu0
    %251 = vdwg.mxu0
    %v252 = vmax.f32 %v249, 0.0
    %v253 = vld [vmem:[#allocation8] sm:$0xff]
    %v254 = vld [vmem:[#allocation8 + $0x8] sm:$0xff]
    %v255 = vld [vmem:[#allocation8 + $0x10] sm:$0xff]
    %v256 = vld [vmem:[#allocation8 + $0x18] sm:$0xff]
    %v257 = vld [vmem:[#allocation8 + $0x20] sm:$0xff]
    %v258 = vld [vmem:[#allocation8 + $0x28] sm:$0xff]
    %v259 = vld [vmem:[#allocation8 + $0x30] sm:$0xff]
    %v260 = vld [vmem:[#allocation8 + $0x38] sm:$0xff]
    %v261 = vld [vmem:[#allocation8 + $0x40] sm:$0xff]
    %v262 = vld [vmem:[#allocation8 + $0x48] sm:$0xff]
    %v263 = vld [vmem:[#allocation8 + $0x50] sm:$0xff]
    %v264 = vld [vmem:[#allocation8 + $0x58] sm:$0xff]
    %v265 = vld [vmem:[#allocation8 + $0x60] sm:$0xff]
    %v266 = vld [vmem:[#allocation8 + $0x68] sm:$0xff]
    %v267 = vld [vmem:[#allocation8 + $0x70] sm:$0xff]
    %v268 = vld [vmem:[#allocation8 + $0x78] sm:$0xff]
    %v269 = vlaneseq
    %v270 = vshrl.u32 %v269, 7
    %v271 = vsub.s32 0, %v270
    %v272 = vrot.slane %v80, %v271
    %273 = vmatprep.subr.mxu0 0.0
    %274 = vmatpush1.msra.mxu0 %v253
    %275 = vmatprep.subr.mxu0 0.0
    %276 = vmatpush1.msra.mxu0 %v254
    %277 = vmatprep.subr.mxu0 0.0
    %278 = vmatpush1.msra.mxu0 %v255
    %279 = vmatprep.subr.mxu0 0.0
    %280 = vmatpush1.msra.mxu0 %v256
    %281 = vmatprep.subr.mxu0 0.0
    %282 = vmatpush1.msra.mxu0 %v257
    %283 = vmatprep.subr.mxu0 0.0
    %284 = vmatpush1.msra.mxu0 %v258
    %285 = vmatprep.subr.mxu0 0.0
    %286 = vmatpush1.msra.mxu0 %v259
    %287 = vmatprep.subr.mxu0 0.0
    %288 = vmatpush1.msra.mxu0 %v260
    %289 = vmatprep.subr.mxu0 0.0
    %290 = vmatpush1.msra.mxu0 %v261
    %291 = vmatprep.subr.mxu0 0.0
    %292 = vmatpush1.msra.mxu0 %v262
    %293 = vmatprep.subr.mxu0 0.0
    %294 = vmatpush1.msra.mxu0 %v263
    %295 = vmatprep.subr.mxu0 0.0
    %296 = vmatpush1.msra.mxu0 %v264
    %297 = vmatprep.subr.mxu0 0.0
    %298 = vmatpush1.msra.mxu0 %v265
    %299 = vmatprep.subr.mxu0 0.0
    %300 = vmatpush1.msra.mxu0 %v266
    %301 = vmatprep.subr.mxu0 0.0
    %302 = vmatpush1.msra.mxu0 %v267
    %303 = vmatprep.subr.mxu0 0.0
    %304 = vmatpush1.msra.mxu0 %v268
    %305 = vmatprep.subr.mxu0 0.0
    %306 = vmatpush1.msra.mxu0 0.0
    %307 = vmatprep.subr.mxu0 0.0
    %308 = vmatpush1.msra.mxu0 0.0
    %309 = vmatprep.subr.mxu0 0.0
    %310 = vmatpush1.msra.mxu0 0.0
    %311 = vmatprep.subr.mxu0 0.0
    %312 = vmatpush1.msra.mxu0 0.0
    %313 = vmatprep.subr.mxu0 0.0
    %314 = vmatpush1.msra.mxu0 0.0
    %315 = vmatprep.subr.mxu0 0.0
    %316 = vmatpush1.msra.mxu0 0.0
    %317 = vmatprep.subr.mxu0 0.0
    %318 = vmatpush1.msra.mxu0 0.0
    %319 = vmatprep.subr.mxu0 0.0
    %320 = vmatpush1.msra.mxu0 0.0
    %321 = vmatprep.subr.mxu0 0.0
    %322 = vmatpush1.msra.mxu0 0.0
    %323 = vmatprep.subr.mxu0 0.0
    %324 = vmatpush1.msra.mxu0 0.0
    %325 = vmatprep.subr.mxu0 0.0
    %326 = vmatpush1.msra.mxu0 0.0
    %327 = vmatprep.subr.mxu0 0.0
    %328 = vmatpush1.msra.mxu0 0.0
    %329 = vmatprep.subr.mxu0 0.0
    %330 = vmatpush1.msra.mxu0 0.0
    %331 = vmatprep.subr.mxu0 0.0
    %332 = vmatpush1.msra.mxu0 0.0
    %333 = vmatprep.subr.mxu0 0.0
    %334 = vmatpush1.msra.mxu0 0.0
    %335 = vmatprep.subr.mxu0 0.0
    %336 = vmatpush1.msra.mxu0 0.0
    %337 = vmatprep.mubr.f32.mxu0 0.0
    %338 = vmatmul.mubr.f32.gmra.mrb[0].mxu0 %v252
    %v339 = vpop.f32.mrb[0].mxu0
    %v340 = vadd.f32 %v272, %v339
    %v341 = vpop.f32.mrb[0].mxu0
    %342 = vdwg.mxu0
    %344 = vset.pattern.permute.xlu0 0
    %345 = vperm.xlu0 %344, %v340
    %v346 = vpop.permute.xlu0 %345
    %v348 = vadd.f32 %v346, %v340
    %349 = vst [vmem:[#allocation10] sm:$0xff] %v348
    %v350 = vrot.slane %v340, 4
    %v351 = vadd.f32 %v340, %v350
    %v352 = vrot.slane %v351, 2
    %v353 = vadd.f32 %v351, %v352
    %v354 = vrot.slane %v353, 1
    %v355 = vadd.f32 %v353, %v354
    %356 = vst [vmem:[#allocation11] sm:$0xff] %v355
    // Predicated region
    $region38: #{tpu_custom_call.1} parent=1 // pred_check
      _
    $region39: #{tpu_custom_call.1} parent=1 // pred_check_branch
      %358 = sbr.rel (0) target = $region41
    $region40: #{tpu_custom_call.1} parent=1 // pred_region
      %s360 = ssub.s32 128, 128
      %361 = vsyncadd [#allocation4], %s360
      %s363 = sshll.u32 [#allocation10], 4
      %s364 = int_to_ptr.vmem [resolvable:$true] %s363
      %366 = dma.vmem_to_hbm [thread:$0]  %s364, 128, %s5, [#allocation4]
    $region41: #{tpu_custom_call.1} parent=1 // pred_fallthru
      _
    // Predicated region
    $region42: #{tpu_custom_call.1} parent=1 // pred_check
      _
    $region43: #{tpu_custom_call.1} parent=1 // pred_check_branch
      %368 = sbr.rel (0) target = $region45
    $region44: #{tpu_custom_call.1} parent=1 // pred_region
      %s370 = ssub.s32 128, 128
      %371 = vsyncadd [#allocation12], %s370
      %s373 = sshll.u32 [#allocation11], 4
      %s374 = int_to_ptr.vmem [resolvable:$true] %s373
      %376 = dma.vmem_to_hbm [thread:$0]  %s374, 128, %s6, [#allocation12]
    $region45: #{tpu_custom_call.1} parent=1 // pred_fallthru
      _
    // Predicated region
    $region46: #{tpu_custom_call.1} parent=1 // pred_check
      _
    $region47: #{tpu_custom_call.1} parent=1 // pred_check_branch
      %378 = sbr.rel (0) target = $region49
    $region48: #{tpu_custom_call.1} parent=1 // pred_region
      %379 = dma.done [#allocation4], 128
    $region49: #{tpu_custom_call.1} parent=1 // pred_fallthru
      _
    // Predicated region
    $region50: #{tpu_custom_call.1} parent=1 // pred_check
      _
    $region51: #{tpu_custom_call.1} parent=1 // pred_check_branch
      %381 = sbr.rel (0) target = $region53
    $region52: #{tpu_custom_call.1} parent=1 // pred_region
      %382 = dma.done [#allocation12], 128
    $region53: #{tpu_custom_call.1} parent=1 // pred_fallthru
      _
    %383 = vsyncpa [#allocation3], 1
    %384 = vsyncpa [#allocation6], 1
    %385 = vsyncpa [#allocation9], 1
    %386 = vsyncpa [#allocation4], 1
    %387 = vsyncpa [#allocation12], 1

</llo_original>
